<compile_context>
chip_gen: v6e
topology: v6e:2x2x1
jax: 0.10.0
libtpu: 0.0.40
codegen_flags: <defaults>
</compile_context>

<pallas_src>
import math
from types import SimpleNamespace

import jax
import jax.numpy as jnp
from jax.experimental import pallas as pl
from jax.experimental.pallas import tpu as pltpu

LANE = 128
_LOG_LO = math.log(1e-4)          # clamp of log(sigmoid) domain == log of clamped sigmoid
_LOG_HI = math.log(1.0 - 1e-4)


# ---------------------------------------------------------------------------
# Kernel 1: fused clamped-sigmoid (_sigmoid) + CenterNet focal loss partial sums
#           + consistency (squared-error) partial sums.
# Each grid step consumes a (tile_rows, 128) block of logits / cr-heatmap / labels
# and writes a lane-dense (3, 128) block of per-lane partials
# [focal_sum, num_pos, sq_err]; the wrapper reduces them once in JAX.
# ---------------------------------------------------------------------------
def _focal_consis_kernel(x_ref, cr_ref, y_ref, out_ref):
    x = x_ref[...].astype(jnp.float32)
    cr = cr_ref[...].astype(jnp.float32)     # output_cr['hm'] used raw (as in torch code)
    y = y_ref[...].astype(jnp.float32)

    # _sigmoid: clamp(sigmoid(x), 1e-4, 1-1e-4); log terms via log-sigmoid identities:
    #   log(sigmoid(x))   = min(x,0) - log(1+exp(-|x|))
    #   log(1-sigmoid(x)) = -max(x,0) - log(1+exp(-|x|))
    e = jnp.exp(-jnp.abs(x))                          # 1 EUP exp
    inv1pe = pl.reciprocal(1.0 + e, approx=True)      # EUP approx reciprocal
    s = jnp.clip(jnp.where(x >= 0.0, 1.0, e) * inv1pe, 1e-4, 1.0 - 1e-4)
    log1pe = jnp.log(1.0 + e)                         # 1 EUP log
    log_s = jnp.clip(jnp.minimum(x, 0.0) - log1pe, _LOG_LO, _LOG_HI)
    log_1ms = jnp.clip(-jnp.maximum(x, 0.0) - log1pe, _LOG_LO, _LOG_HI)

    pos = (y == 1.0).astype(jnp.float32)
    neg = (y < 1.0).astype(jnp.float32)
    neg_w = jnp.square(jnp.square(1.0 - y))
    focal = (log_s * jnp.square(1.0 - s) * pos
             + log_1ms * jnp.square(s) * neg_w * neg)
    d = s - cr

    out_ref[...] = jnp.concatenate(
        [jnp.sum(focal, axis=0, keepdims=True),
         jnp.sum(pos, axis=0, keepdims=True),
         jnp.sum(d * d, axis=0, keepdims=True)],
        axis=0)                                       # (3, LANE), lane-dense store


def focal_consis_sums(hm_logit, hm_cr, label, tile_rows=1024):
    """Returns (focal_sum, num_pos, sq_err_sum) over all heatmap elements."""
    n = hm_logit.size
    x = hm_logit.reshape(-1)
    cr = hm_cr.reshape(-1)
    y = label.reshape(-1)

    tile_elems = tile_rows * LANE
    if n % tile_elems == 0:
        n_pad, rows_per_tile = n, tile_rows
    else:
        if n < tile_elems:
            n_pad = pl.cdiv(n, 8 * LANE) * (8 * LANE)
            rows_per_tile = n_pad // LANE
        else:
            n_pad = pl.cdiv(n, tile_elems) * tile_elems
            rows_per_tile = tile_rows
        pad = n_pad - n
        # Neutral pads: logit 0 -> s = 0.5; cr 0.5 -> zero sq-err; label 2.0 -> neither pos nor neg.
        x = jnp.pad(x, (0, pad))
        cr = jnp.pad(cr, (0, pad), constant_values=0.5)
        y = jnp.pad(y, (0, pad), constant_values=2.0)

    rows = n_pad // LANE
    num_tiles = rows // rows_per_tile

    partials = pl.pallas_call(
        _focal_consis_kernel,
        out_shape=jax.ShapeDtypeStruct((3, num_tiles * LANE), jnp.float32),
        grid=(num_tiles,),
        in_specs=[pl.BlockSpec((rows_per_tile, LANE), lambda i: (i, 0))] * 3,
        out_specs=pl.BlockSpec((3, LANE), lambda i: (0, i)),
        compiler_params=pltpu.CompilerParams(dimension_semantics=("parallel",)),
    )(x.reshape(rows, LANE), cr.reshape(rows, LANE), y.reshape(rows, LANE))

    sums = jnp.sum(partials, axis=1)
    return sums[0], sums[1], sums[2]


# ---------------------------------------------------------------------------
# Kernel 2: supervised cross-view contrastive loss (SupConLossV2_more path).
#   anchors  = pixels whose gt label == 1 (view-1 features, pre-normalised, /temp folded)
#   contrast = all pixels of view 2 (output_cr features, pre-normalised)
#   loss_i   = logsumexp_k(z_ik) - mean_{j: y_j==1} z_ij          (z = f_i . g_k / T)
# Flash-style online LSE over tiled contrast axis; per-anchor-tile positive counts and
# the total positive count are scalar-prefetched so (a) tiles with no anchors skip both
# the compute and the contrast-side DMAs, and (b) no per-step scalar accumulation.
# TODO(synk): exact SupConLossV2_more internals (use of output_hm / output_hm_cr
#             confidences) are not in the provided source; standard cross-view SupCon used.
# ---------------------------------------------------------------------------
def _supcon_kernel(cnt_ref, f_ref, g_ref, ya_ref, yc_ref,
                   loss_ref, count_ref, m_sc, l_sc, s_sc):
    i = pl.program_id(0)                 # anchor-tile index   (parallel)
    j = pl.program_id(1)                 # contrast-tile index (reduction)
    nj = pl.num_programs(1)
    has_anchor = cnt_ref[i] > 0

    @pl.when(jnp.logical_and(has_anchor, j == 0))
    def _init():
        m_sc[...] = jnp.full(m_sc.shape, -jnp.inf, jnp.float32)
        l_sc[...] = jnp.zeros(l_sc.shape, jnp.float32)
        s_sc[...] = jnp.zeros(s_sc.shape, jnp.float32)

    @pl.when(has_anchor)
    def _update():
        f = f_ref[...]                   # (C, TM) bf16, already L2-normalised * (1/temp)
        g = g_ref[...]                   # (C, TN) bf16, already L2-normalised
        z = jax.lax.dot_general(         # (TM, TN) f32 logits on the MXU
            f, g, (((0,), (0,)), ((), ())),
            preferred_element_type=jnp.float32)

        yc = yc_ref[...]                 # (1, TN) contrast labels (-1 marks padding)
        z = jnp.where(yc >= 0.0, z, -1e30)           # exclude padded columns from LSE
        pos_j = (yc == 1.0).astype(jnp.float32)      # (1, TN)

        m_prev = m_sc[...]                           # (TM, 1)
        m_new = jnp.maximum(m_prev, jnp.max(z, axis=-1, keepdims=True))
        alpha = jnp.exp(m_prev - m_new)
        l_sc[...] = alpha * l_sc[...] + jnp.sum(jnp.exp(z - m_new), axis=-1, keepdims=True)
        m_sc[...] = m_new
        s_sc[...] = s_sc[...] + jnp.sum(z * pos_j, axis=-1, keepdims=True)

    @pl.when(j == nj - 1)
    def _finalize():
        pos_i = (ya_ref[...] == 1.0).astype(jnp.float32)       # (TM, 1)
        lse = m_sc[...] + jnp.log(l_sc[...])
        # total positive count (prefetched, stored past the per-tile counts)
        p = jnp.maximum(cnt_ref[pl.num_programs(0)].astype(jnp.float32), 1.0)
        contrib = jnp.where(has_anchor, pos_i * (lse - s_sc[...] / p), 0.0)
        loss_ref[...] = contrib                                 # per-anchor loss terms
        count_ref[...] = pos_i                                  # per-anchor counts


def supcon_sums(feat_cm, feat_cr_cm, label_flat, temp, tm=256, tn=256):
    """feat_cm / feat_cr_cm: channel-major (C, N) features.  Returns (loss_sum, anchor_count)."""
    c, n = feat_cm.shape
    inv_t = 1.0 / float(temp)

    # L2-normalise once in the wrapper (fold 1/temp into anchors), then drop to bf16 for the MXU.
    f = feat_cm.astype(jnp.float32)
    g = feat_cr_cm.astype(jnp.float32)
    f = f * jax.lax.rsqrt(jnp.sum(f * f, axis=0, keepdims=True) + 1e-12) * inv_t
    g = g * jax.lax.rsqrt(jnp.sum(g * g, axis=0, keepdims=True) + 1e-12)
    y = label_flat.astype(jnp.float32)

    tile = (tm * tn) // math.gcd(tm, tn)
    n_pad = pl.cdiv(n, tile) * tile
    if n_pad != n:
        pad = n_pad - n
        f = jnp.pad(f, ((0, 0), (0, pad)))
        g = jnp.pad(g, ((0, 0), (0, pad)))
        y = jnp.pad(y, (0, pad), constant_values=-1.0)   # -1 marks padded pixels

    f_bf = f.astype(jnp.bfloat16)
    g_bf = g.astype(jnp.bfloat16)
    ya = y.reshape(n_pad, 1)
    yc = y.reshape(1, n_pad)
    na, nc = n_pad // tm, n_pad // tn

    # Scalar prefetch: per-anchor-tile positive counts + total positive count appended.
    tile_cnt = jnp.sum((y == 1.0).reshape(na, tm), axis=1).astype(jnp.int32)
    cnt_info = jnp.concatenate([tile_cnt, jnp.sum(tile_cnt)[None]], axis=0)

    def contrast_index(i, j, cnt):
        # Anchor tiles with no positives remap all contrast blocks to block 0 (already
        # resident after the first fetch), so skipped tiles trigger no new contrast DMA.
        return (0, j * jnp.minimum(cnt[i], 1))

    grid_spec = pltpu.PrefetchScalarGridSpec(
        num_scalar_prefetch=1,
        grid=(na, nc),
        in_specs=[
            pl.BlockSpec((c, tm), lambda i, j, cnt: (0, i)),   # anchor features (lane-dense)
            pl.BlockSpec((c, tn), contrast_index),             # contrast features (lane-dense)
            pl.BlockSpec((tm, 1), lambda i, j, cnt: (i, 0)),   # anchor labels
            pl.BlockSpec((1, tn), contrast_index),             # contrast labels
        ],
        out_specs=[
            pl.BlockSpec((tm, 1), lambda i, j, cnt: (i, 0)),   # per-anchor loss terms
            pl.BlockSpec((tm, 1), lambda i, j, cnt: (i, 0)),   # per-anchor counts
        ],
        scratch_shapes=[
            pltpu.VMEM((tm, 1), jnp.float32),   # running max m
            pltpu.VMEM((tm, 1), jnp.float32),   # running denom l
            pltpu.VMEM((tm, 1), jnp.float32),   # running positive-logit sum s
        ],
    )

    loss_per, count_per = pl.pallas_call(
        _supcon_kernel,
        out_shape=(jax.ShapeDtypeStruct((n_pad, 1), jnp.float32),
                   jax.ShapeDtypeStruct((n_pad, 1), jnp.float32)),
        grid_spec=grid_spec,
        compiler_params=pltpu.CompilerParams(
            dimension_semantics=("parallel", "arbitrary"),
            vmem_limit_bytes=32 * 1024 * 1024,
        ),
    )(cnt_info, f_bf, g_bf, ya, yc)

    return jnp.sum(loss_per), jnp.sum(count_per)


# ---------------------------------------------------------------------------
# Forward pass (glue in plain JAX, hot paths in the two kernels above).
# ---------------------------------------------------------------------------
def tomo_cr_class_loss(outputs, batch, epoch, phase, output_cr, opt):
    num_stacks = opt.num_stacks
    output = outputs[num_stacks - 1]
    out_cr = output_cr[num_stacks - 1] if output_cr is not None else None

    hm_logit = output['hm']                               # raw logits (native dtype)
    target = batch['label'] if phase == 'train' else batch['hm']
    hm_cr = out_cr['hm'] if out_cr is not None else jnp.zeros_like(hm_logit)

    focal_sum, num_pos, sq_sum = focal_consis_sums(hm_logit, hm_cr, target)
    hm_loss = -jnp.where(num_pos == 0.0, focal_sum,
                         focal_sum / jnp.maximum(num_pos, 1.0)) / num_stacks

    if opt.contrastive and phase == 'train' and out_cr is not None:
        b, ch = output['proj'].shape[0], output['proj'].shape[1]
        # channel-major (ch, N): the torch chain (b,ch,-1)->permute(1,0,2)->reshape(ch,-1)
        # (its .T is applied implicitly by contracting over the channel axis in the kernel).
        fm = jnp.transpose(output['proj'].reshape(b, ch, -1), (1, 0, 2)).reshape(ch, -1)
        fm_cr = jnp.transpose(out_cr['proj'].reshape(b, ch, -1), (1, 0, 2)).reshape(ch, -1)
        gt_flat = batch['label'].reshape(-1)

        loss_sum, n_anchor = supcon_sums(fm, fm_cr, gt_flat, opt.temp)
        cr_loss = loss_sum / jnp.maximum(n_anchor, 1.0)

        # TODO(synk): ConsistencyLoss source not provided; implemented as MSE(clamped sigmoid(hm), hm_cr).
        consis_loss = sq_sum / hm_logit.size
        loss = hm_loss + cr_loss * opt.cr_weight + consis_loss
    else:
        cr_loss = hm_loss * 0
        consis_loss = hm_loss * 0
        loss = hm_loss

    loss_stats = {'loss': loss, 'hm_loss': hm_loss,
                  'cr_loss': cr_loss, 'consis_loss': consis_loss}
    return loss, loss_stats


if __name__ == "__main__":
    key = jax.random.PRNGKey(0)
    k1, k2, k3, k4, k5 = jax.random.split(key, 5)

    B, C, D, W, H = 2, 16, 4, 8, 8          # N = B*D*W*H = 512
    hm = jax.random.normal(k1, (B, D, W, H), jnp.float32)                      # raw logits
    hm_cr = jax.nn.sigmoid(jax.random.normal(k2, (B, D, W, H), jnp.float32))   # cr head (prob)
    proj = jax.random.normal(k3, (B, C, D, W, H), jnp.float32)
    proj_cr = jax.random.normal(k4, (B, C, D, W, H), jnp.float32)
    u = jax.random.uniform(k5, (B, D, W, H), jnp.float32)
    label = jnp.where(u > 0.95, 1.0, 0.8 * u).astype(jnp.float32)              # sparse exact-1 peaks

    opt = SimpleNamespace(num_stacks=1, pn=True, ge=False, contrastive=True,
                          temp=0.07, tau=0.5, thresh=0.5, cr_weight=0.1)

    outputs = [{'hm': hm, 'proj': proj}]
    output_cr = [{'hm': hm_cr, 'proj': proj_cr}]
    batch = {'label': label, 'hm': label}

    loss, stats = tomo_cr_class_loss(outputs, batch, epoch=0, phase='train',
                                     output_cr=output_cr, opt=opt)
    jax.block_until_ready(loss)
    for v in stats.values():
        jax.block_until_ready(v)
    print("KERNEL_OK")
</pallas_src>

<mosaic_0001>
module attributes {stable_mosaic.version = 11 : i64} {
  func.func @_focal_consis_kernel(%arg0: i32, %arg1: memref<8x128xf32, #tpu.memory_space<vmem>>, %arg2: memref<8x128xf32, #tpu.memory_space<vmem>>, %arg3: memref<8x128xf32, #tpu.memory_space<vmem>>, %arg4: memref<3x128xf32, #tpu.memory_space<vmem>>) attributes {dimension_semantics = [#tpu.dimension_semantics<parallel>], iteration_bounds = array<i64: 1>, scalar_prefetch = 0 : i64, scratch_operands = 0 : i64, tpu.core_type = #tpu.core_type<tc>, window_params = [{transform_indices = @transform_0, window_bounds = array<i64: 8, 128>}, {transform_indices = @transform_1, window_bounds = array<i64: 8, 128>}, {transform_indices = @transform_2, window_bounds = array<i64: 8, 128>}, {transform_indices = @transform_3, window_bounds = array<i64: 3, 128>}]} {
    %c0 = arith.constant 0 : index
    %c0_0 = arith.constant 0 : index
    %0 = vector.load %arg1[%c0, %c0_0] : memref<8x128xf32, #tpu.memory_space<vmem>>, vector<8x128xf32>
    %c0_1 = arith.constant 0 : index
    %c0_2 = arith.constant 0 : index
    %1 = vector.load %arg2[%c0_1, %c0_2] : memref<8x128xf32, #tpu.memory_space<vmem>>, vector<8x128xf32>
    %c0_3 = arith.constant 0 : index
    %c0_4 = arith.constant 0 : index
    %2 = vector.load %arg3[%c0_3, %c0_4] : memref<8x128xf32, #tpu.memory_space<vmem>>, vector<8x128xf32>
    %3 = math.absf %0 : vector<8x128xf32>
    %cst = arith.constant 0.000000e+00 : f32
    %4 = vector.broadcast %cst : f32 to vector<8x128xf32>
    %5 = arith.subf %4, %3 : vector<8x128xf32>
    %6 = math.exp %5 : vector<8x128xf32>
    %cst_5 = arith.constant 1.000000e+00 : f32
    %7 = vector.broadcast %cst_5 : f32 to vector<8x128xf32>
    %8 = arith.addf %7, %6 : vector<8x128xf32>
    %9 = tpu.reciprocal %8 {approx = true} : vector<8x128xf32> -> vector<8x128xf32>
    %cst_6 = arith.constant 0.000000e+00 : f32
    %10 = vector.broadcast %cst_6 : f32 to vector<8x128xf32>
    %11 = arith.cmpf oge, %0, %10 : vector<8x128xf32>
    %cst_7 = arith.constant 1.000000e+00 : f32
    %12 = vector.broadcast %cst_7 : f32 to vector<8x128xf32>
    %13 = arith.select %11, %12, %6 : vector<8x128xi1>, vector<8x128xf32>
    %14 = arith.mulf %13, %9 : vector<8x128xf32>
    %cst_8 = arith.constant 9.99999974E-5 : f32
    %cst_9 = arith.constant 0.999899983 : f32
    %15 = vector.broadcast %cst_8 : f32 to vector<8x128xf32>
    %16 = arith.maximumf %15, %14 : vector<8x128xf32>
    %17 = vector.broadcast %cst_9 : f32 to vector<8x128xf32>
    %18 = arith.minimumf %17, %16 : vector<8x128xf32>
    %cst_10 = arith.constant 1.000000e+00 : f32
    %19 = vector.broadcast %cst_10 : f32 to vector<8x128xf32>
    %20 = arith.addf %19, %6 : vector<8x128xf32>
    %21 = math.log %20 : vector<8x128xf32>
    %cst_11 = arith.constant 0.000000e+00 : f32
    %22 = vector.broadcast %cst_11 : f32 to vector<8x128xf32>
    %23 = arith.minimumf %0, %22 : vector<8x128xf32>
    %24 = arith.subf %23, %21 : vector<8x128xf32>
    %cst_12 = arith.constant -9.21034049 : f32
    %cst_13 = arith.constant -1.000050e-04 : f32
    %25 = vector.broadcast %cst_12 : f32 to vector<8x128xf32>
    %26 = arith.maximumf %25, %24 : vector<8x128xf32>
    %27 = vector.broadcast %cst_13 : f32 to vector<8x128xf32>
    %28 = arith.minimumf %27, %26 : vector<8x128xf32>
    %cst_14 = arith.constant 0.000000e+00 : f32
    %29 = vector.broadcast %cst_14 : f32 to vector<8x128xf32>
    %30 = arith.maximumf %0, %29 : vector<8x128xf32>
    %cst_15 = arith.constant 0.000000e+00 : f32
    %31 = vector.broadcast %cst_15 : f32 to vector<8x128xf32>
    %32 = arith.subf %31, %30 : vector<8x128xf32>
    %33 = arith.subf %32, %21 : vector<8x128xf32>
    %cst_16 = arith.constant -9.21034049 : f32
    %cst_17 = arith.constant -1.000050e-04 : f32
    %34 = vector.broadcast %cst_16 : f32 to vector<8x128xf32>
    %35 = arith.maximumf %34, %33 : vector<8x128xf32>
    %36 = vector.broadcast %cst_17 : f32 to vector<8x128xf32>
    %37 = arith.minimumf %36, %35 : vector<8x128xf32>
    %cst_18 = arith.constant 1.000000e+00 : f32
    %38 = vector.broadcast %cst_18 : f32 to vector<8x128xf32>
    %39 = arith.cmpf oeq, %2, %38 : vector<8x128xf32>
    %40 = arith.extui %39 : vector<8x128xi1> to vector<8x128xi32>
    %41 = arith.sitofp %40 : vector<8x128xi32> to vector<8x128xf32>
    %cst_19 = arith.constant 1.000000e+00 : f32
    %42 = vector.broadcast %cst_19 : f32 to vector<8x128xf32>
    %43 = arith.cmpf olt, %2, %42 : vector<8x128xf32>
    %44 = arith.extui %43 : vector<8x128xi1> to vector<8x128xi32>
    %45 = arith.sitofp %44 : vector<8x128xi32> to vector<8x128xf32>
    %cst_20 = arith.constant 1.000000e+00 : f32
    %46 = vector.broadcast %cst_20 : f32 to vector<8x128xf32>
    %47 = arith.subf %46, %2 : vector<8x128xf32>
    %48 = arith.mulf %47, %47 : vector<8x128xf32>
    %49 = arith.mulf %48, %48 : vector<8x128xf32>
    %cst_21 = arith.constant 1.000000e+00 : f32
    %50 = vector.broadcast %cst_21 : f32 to vector<8x128xf32>
    %51 = arith.subf %50, %18 : vector<8x128xf32>
    %52 = arith.mulf %51, %51 : vector<8x128xf32>
    %53 = arith.mulf %28, %52 : vector<8x128xf32>
    %54 = arith.mulf %53, %41 : vector<8x128xf32>
    %55 = arith.mulf %18, %18 : vector<8x128xf32>
    %56 = arith.mulf %37, %55 : vector<8x128xf32>
    %57 = arith.mulf %56, %49 : vector<8x128xf32>
    %58 = arith.mulf %57, %45 : vector<8x128xf32>
    %59 = arith.addf %54, %58 : vector<8x128xf32>
    %60 = arith.subf %18, %1 : vector<8x128xf32>
    %cst_22 = arith.constant dense<0.000000e+00> : vector<128xf32>
    %61 = vector.multi_reduction <add>, %59, %cst_22 [0] : vector<8x128xf32> to vector<128xf32>
    %62 = vector.shape_cast %61 : vector<128xf32> to vector<1x128xf32>
    %cst_23 = arith.constant dense<0.000000e+00> : vector<128xf32>
    %63 = vector.multi_reduction <add>, %41, %cst_23 [0] : vector<8x128xf32> to vector<128xf32>
    %64 = vector.shape_cast %63 : vector<128xf32> to vector<1x128xf32>
    %65 = arith.mulf %60, %60 : vector<8x128xf32>
    %cst_24 = arith.constant dense<0.000000e+00> : vector<128xf32>
    %66 = vector.multi_reduction <add>, %65, %cst_24 [0] : vector<8x128xf32> to vector<128xf32>
    %67 = vector.shape_cast %66 : vector<128xf32> to vector<1x128xf32>
    %68 = tpu.concatenate %62, %64, %67 in 0 : vector<1x128xf32>, vector<1x128xf32>, vector<1x128xf32> -> vector<3x128xf32>
    %c0_25 = arith.constant 0 : index
    %c0_26 = arith.constant 0 : index
    %69 = vector.load %arg4[%c0_25, %c0_26] : memref<3x128xf32, #tpu.memory_space<vmem>>, vector<3x128xf32>
    tpu.vector_store %arg4[%c0_25, %c0_26], %68 {strides = array<i32>} : memref<3x128xf32, #tpu.memory_space<vmem>>, vector<3x128xf32>,
    return
  }
  func.func @transform_0(%arg0: i32) -> (i32, i32) {
    %c0_i32 = arith.constant 0 : i32
    %c0_i32_0 = arith.constant 0 : i32
    return %arg0, %c0_i32 : i32, i32
  }
  func.func @transform_1(%arg0: i32) -> (i32, i32) {
    %c0_i32 = arith.constant 0 : i32
    %c0_i32_0 = arith.constant 0 : i32
    return %arg0, %c0_i32 : i32, i32
  }
  func.func @transform_2(%arg0: i32) -> (i32, i32) {
    %c0_i32 = arith.constant 0 : i32
    %c0_i32_0 = arith.constant 0 : i32
    return %arg0, %c0_i32 : i32, i32
  }
  func.func @transform_3(%arg0: i32) -> (i32, i32) {
    %c0_i32 = arith.constant 0 : i32
    %c0_i32_0 = arith.constant 0 : i32
    return %c0_i32, %arg0 : i32, i32
  }
}

</mosaic_0001>

<llo_original>
// kernel: tpu_custom_call.1
$region0: #{tpu_custom_call.1}
  #allocation0 [shape = 'u32[]', space=smem, size = 0x4, offset = 0x4, fixed_abs, tag = 'smem constant byte address 0x4 - core index']
  #allocation1 [shape = 'u32[144,128]{1,0:T(1,128)}', space=vmem, size = 0x12000, scoped, tag = 'internal scratch']
  %s0 = inlined_call_operand.hbm [shape: f32[8,128], index: 0, kind: input, shape index: {}]
  %s1 = inlined_call_operand.hbm [shape: f32[8,128], index: 1, kind: input, shape index: {}]
  %s2 = inlined_call_operand.hbm [shape: f32[8,128], index: 2, kind: input, shape index: {}]
  %s3 = inlined_call_operand.hbm [shape: f32[3,128], index: 3, kind: output, shape index: {}]
  %s4 = sld [smem:[#allocation0]]
  $region34: #{tpu_custom_call.1} parent=0
    _
  %s6 = ssub.s32 1, %s4
  %s7 = scalar_select 0, %s6, %s4
  $region1: #{tpu_custom_call.1} parent=0
    #allocation2 [shape = 'u8[4096]{0}', space=vmem, size = 0x1000, scoped, tag = 'input window, operand 0, single buffered']
    #allocation3 [shape = 's32[1]{0}', space=sflag, size = 0x4, scoped, tag = 'scoped memory for tpu_custom_call.1']
    #allocation4 [shape = 's32[1]{0}', space=sflag, size = 0x4, scoped, tag = 'scoped memory for tpu_custom_call.1']
    #allocation5 [shape = 'u8[4096]{0}', space=vmem, size = 0x1000, scoped, tag = 'input window, operand 1, single buffered']
    #allocation6 [shape = 's32[1]{0}', space=sflag, size = 0x4, scoped, tag = 'scoped memory for tpu_custom_call.1']
    #allocation7 [shape = 'u8[4096]{0}', space=vmem, size = 0x1000, scoped, tag = 'input window, operand 2, single buffered']
    #allocation8 [shape = 'u8[2048]{0}', space=vmem, size = 0x800, scoped, tag = 'output window, operand 0, single buffered']
    %8 = vsyncpa [#allocation3], 0
    %9 = vsyncpa [#allocation6], 0
    %10 = vsyncpa [#allocation4], 0
    // Predicated region
    $region2: #{tpu_custom_call.1} parent=1 // pred_check
      _
    $region3: #{tpu_custom_call.1} parent=1 // pred_check_branch
      %12 = sbr.rel (0) target = $region5
    $region4: #{tpu_custom_call.1} parent=1 // pred_region
      %s14 = ssub.s32 128, 128
      %15 = vsyncadd [#allocation3], %s14
      %s17 = sshll.u32 [#allocation2], 4
      %s18 = int_to_ptr.vmem [resolvable:$true] %s17
      %20 = dma.hbm_to_vmem [thread:$0]  %s0, 128, %s18, [#allocation3]
    $region5: #{tpu_custom_call.1} parent=1 // pred_fallthru
      _
    // Predicated region
    $region6: #{tpu_custom_call.1} parent=1 // pred_check
      _
    $region7: #{tpu_custom_call.1} parent=1 // pred_check_branch
      %22 = sbr.rel (0) target = $region9
    $region8: #{tpu_custom_call.1} parent=1 // pred_region
      %s24 = ssub.s32 128, 128
      %25 = vsyncadd [#allocation6], %s24
      %s27 = sshll.u32 [#allocation5], 4
      %s28 = int_to_ptr.vmem [resolvable:$true] %s27
      %30 = dma.hbm_to_vmem [thread:$0]  %s1, 128, %s28, [#allocation6]
    $region9: #{tpu_custom_call.1} parent=1 // pred_fallthru
      _
    // Predicated region
    $region10: #{tpu_custom_call.1} parent=1 // pred_check
      _
    $region11: #{tpu_custom_call.1} parent=1 // pred_check_branch
      %32 = sbr.rel (0) target = $region13
    $region12: #{tpu_custom_call.1} parent=1 // pred_region
      %s34 = ssub.s32 128, 128
      %35 = vsyncadd [#allocation6], %s34
      %s37 = sshll.u32 [#allocation7], 4
      %s38 = int_to_ptr.vmem [resolvable:$true] %s37
      %40 = dma.hbm_to_vmem [thread:$0]  %s2, 128, %s38, [#allocation6]
    $region13: #{tpu_custom_call.1} parent=1 // pred_fallthru
      _
    // Predicated region
    $region14: #{tpu_custom_call.1} parent=1 // pred_check
      _
    $region15: #{tpu_custom_call.1} parent=1 // pred_check_branch
      %42 = sbr.rel (0) target = $region17
    $region16: #{tpu_custom_call.1} parent=1 // pred_region
      %43 = dma.done [#allocation3], 128
    $region17: #{tpu_custom_call.1} parent=1 // pred_fallthru
      _
    // Predicated region
    $region18: #{tpu_custom_call.1} parent=1 // pred_check
      _
    $region19: #{tpu_custom_call.1} parent=1 // pred_check_branch
      %45 = sbr.rel (0) target = $region21
    $region20: #{tpu_custom_call.1} parent=1 // pred_region
      %46 = dma.done [#allocation6], 128
    $region21: #{tpu_custom_call.1} parent=1 // pred_fallthru
      _
    // Predicated region
    $region22: #{tpu_custom_call.1} parent=1 // pred_check
      _
    $region23: #{tpu_custom_call.1} parent=1 // pred_check_branch
      %48 = sbr.rel (0) target = $region25
    $region24: #{tpu_custom_call.1} parent=1 // pred_region
      %49 = dma.done [#allocation6], 128
    $region25: #{tpu_custom_call.1} parent=1 // pred_fallthru
      _
    %v50 = vld [vmem:[#allocation2] sm:$0xff]
    %v51 = vld [vmem:[#allocation5] sm:$0xff]
    %v52 = vld [vmem:[#allocation7] sm:$0xff]
    %v53 = vand.u32 2147483647, %v50
    %v54 = vsub.f32 0.0, %v53
    %v55 = vmul.f32 %v54, 1.442695
    %v56 = vpow.pop %v55
    %v57 = vadd.f32 %v56, 1.0
    %v58 = vrcp.pop %v57
    %vm59 = vcmp.ge.f32.partialorder %v50, 0.0
    %v60 = vsel %vm59, 1.0, %v56
    %v61 = vmul.f32 %v60, %v58
    %v62 = vmax.f32 %v61, 0.0001
    %v63 = vmin.f32 %v62, 0.9999
    %v64 = vlog2.pop %v57
    %v65 = vmul.f32 %v64, 0.6931472
    %v66 = vmin.f32 %v50, 0.0
    %v67 = vsub.f32 %v66, %v65
    %v68 = vmax.f32 %v67, -9.2103405
    %v69 = vmin.f32 %v68, -0.000100005
    %v70 = vmax.f32 %v50, 0.0
    %v71 = vsub.f32 0.0, %v70
    %v72 = vsub.f32 %v71, %v65
    %v73 = vmax.f32 %v72, -9.2103405
    %v74 = vmin.f32 %v73, -0.000100005
    %vm75 = vcmp.eq.f32.partialorder %v52, 1.0
    %v76 = vsel %vm75, 1, 0
    %v77 = vcvt.s32.f32 %v76
    %vm78 = vcmp.lt.f32.partialorder %v52, 1.0
    %v79 = vsel %vm78, 1, 0
    %v80 = vcvt.s32.f32 %v79
    %v81 = vsub.f32 1.0, %v52
    %v82 = vmul.f32 %v81, %v81
    %v83 = vmul.f32 %v82, %v82
    %v84 = vsub.f32 1.0, %v63
    %v85 = vmul.f32 %v84, %v84
    %v86 = vmul.f32 %v69, %v85
    %v87 = vmul.f32 %v86, %v77
    %v88 = vmul.f32 %v63, %v63
    %v89 = vmul.f32 %v74, %v88
    %v90 = vmul.f32 %v89, %v83
    %v91 = vmul.f32 %v90, %v80
    %v92 = vadd.f32 %v87, %v91
    %v93 = vsub.f32 %v63, %v51
    %v94 = vrot.slane %v92, 4
    %v95 = vadd.f32 %v92, %v94
    %v96 = vrot.slane %v95, 2
    %v97 = vadd.f32 %v95, %v96
    %v98 = vrot.slane %v97, 1
    %v99 = vadd.f32 %v97, %v98
    %v100 = vrot.slane %v77, 4
    %v101 = vadd.f32 %v77, %v100
    %v102 = vrot.slane %v101, 2
    %v103 = vadd.f32 %v101, %v102
    %v104 = vrot.slane %v103, 1
    %v105 = vadd.f32 %v103, %v104
    %v106 = vmul.f32 %v93, %v93
    %v107 = vrot.slane %v106, 4
    %v108 = vadd.f32 %v106, %v107
    %v109 = vrot.slane %v108, 2
    %v110 = vadd.f32 %v108, %v109
    %v111 = vrot.slane %v110, 1
    %v112 = vadd.f32 %v110, %v111
    %vm113 = vcmask 1040384
    %v114 = vsel %vm113, %v99, %v105
    %vm115 = vcmask 1041408
    %v116 = vsel %vm115, %v114, %v112
    %117 = vst [vmem:[#allocation8] sm:$0x7] %v116
    // Predicated region
    $region26: #{tpu_custom_call.1} parent=1 // pred_check
      _
    $region27: #{tpu_custom_call.1} parent=1 // pred_check_branch
      %119 = sbr.rel (0) target = $region29
    $region28: #{tpu_custom_call.1} parent=1 // pred_region
      %s121 = ssub.s32 64, 64
      %122 = vsyncadd [#allocation4], %s121
      %s124 = sshll.u32 [#allocation8], 4
      %s125 = int_to_ptr.vmem [resolvable:$true] %s124
      %127 = dma.vmem_to_hbm [thread:$0]  %s125, 64, %s3, [#allocation4]
    $region29: #{tpu_custom_call.1} parent=1 // pred_fallthru
      _
    // Predicated region
    $region30: #{tpu_custom_call.1} parent=1 // pred_check
      _
    $region31: #{tpu_custom_call.1} parent=1 // pred_check_branch
      %129 = sbr.rel (0) target = $region33
    $region32: #{tpu_custom_call.1} parent=1 // pred_region
      %130 = dma.done [#allocation4], 64
    $region33: #{tpu_custom_call.1} parent=1 // pred_fallthru
      _
    %131 = vsyncpa [#allocation3], 1
    %132 = vsyncpa [#allocation6], 1
    %133 = vsyncpa [#allocation4], 1

</llo_original>
